<compile_context>
chip_gen: v7x
topology: tpu7x:2x2x1
jax: 0.10.0
libtpu: 0.0.40
codegen_flags: <defaults>
</compile_context>

<pallas_src>
import numpy as np
import jax
import jax.numpy as jnp
from jax.experimental import pallas as pl
from jax.experimental.pallas import tpu as pltpu

_LANES = 128


def get_coef(iter_percentage, method="cos"):
    # Host-side scalar schedule, identical to the PyTorch module.
    if method == "linear":
        milestones = (0.3, 0.7)
        coef_range = (0, 1)
        min_point, max_point = min(milestones), max(milestones)
        min_coef, max_coef = min(coef_range), max(coef_range)
        if iter_percentage < min_point:
            ual_coef = min_coef
        elif iter_percentage > max_point:
            ual_coef = max_coef
        else:
            ratio = (max_coef - min_coef) / (max_point - min_point)
            ual_coef = ratio * (iter_percentage - min_point)
    elif method == "cos":
        coef_range = (0, 1)
        min_coef, max_coef = min(coef_range), max(coef_range)
        normalized_coef = (1 - np.cos(iter_percentage * np.pi)) / 2
        ual_coef = normalized_coef * (max_coef - min_coef) + min_coef
    else:
        ual_coef = 1.0
    return float(ual_coef)


def _make_ua_sumsq_kernel(rows, tile_rows, chunks):
    """Kernel accumulating sum((2*sigmoid(x)-1)^2) over a 1-D chunk grid."""
    lanes = _LANES
    tail_rows = rows - (chunks - 1) * tile_rows   # valid rows of the last block
    rows_aligned = (tile_rows % 8) == 0

    def kernel(x_ref, out_ref):
        k = pl.program_id(0)

        @pl.when(k == 0)
        def _init():
            out_ref[...] = jnp.zeros_like(out_ref)

        x = x_ref[...].astype(jnp.float32)        # bf16 inputs also supported

        if tail_rows != tile_rows:
            # Ragged boundary block: zero the garbage rows Pallas padded in
            # (mask BEFORE tanh so inf/nan garbage never propagates).
            valid = jnp.minimum(rows - k * tile_rows, tile_rows)
            row_id = jax.lax.broadcasted_iota(jnp.int32, (tile_rows, lanes), 0)
            x = jnp.where(row_id < valid, x, 0.0)

        t = jnp.tanh(0.5 * x)                     # == 2*sigmoid(x) - 1, one EUP op
        sq = t * t

        if rows_aligned:
            # Per-chunk vreg tree-sum: (T,128) -> (T/8,8,128), reduce leading
            # dim (pure elementwise vreg adds, no XLU), one add into the
            # (8,128) accumulator resident in the output block.
            out_ref[...] += jnp.sum(sq.reshape(tile_rows // 8, 8, lanes), axis=0)
        else:
            # Only reachable when the whole problem is one tiny full-extent
            # block whose row count is not a multiple of 8 (chunks == 1).
            col = jnp.sum(sq, axis=0, keepdims=True)              # (1, lanes)
            row_id = jax.lax.broadcasted_iota(jnp.int32, (8, lanes), 0)
            out_ref[...] = jnp.where(row_id == 0, col, 0.0)

    return kernel


def ua_loss(seg_logits, seg_gts=None, iter_percentage=0.0, *, max_tile_rows=8192):
    """Forward of UALoss: mean(1 - |2*sigmoid(x)-1|^2) * coef(iter_percentage)."""
    del seg_gts  # unused by the reference forward; kept for signature parity
    coef = get_coef(iter_percentage)

    total = int(np.prod(seg_logits.shape))
    lanes = _LANES
    max_tile_rows = max(32, (max_tile_rows // 32) * 32)   # keep 32-row alignment

    x = jnp.reshape(seg_logits, (-1,))            # free (layout-preserving) reshape
    if total % lanes != 0:
        # Rare fallback (element count not lane-aligned): pad <128 zeros.
        # tanh(0)^2 == 0 so the padding is exact; divisor below stays `total`.
        # NOTE: jnp.pad materializes a copy; common NCHW shapes never hit this.
        x = jnp.pad(x, (0, lanes - total % lanes))
    rows = x.shape[0] // lanes
    x2 = x.reshape(rows, lanes)                   # free reshape, lane-dense tiles

    # Tile sizing: 4 MiB f32 blocks (8192 x 128) amortize per-grid-step
    # overhead and fit every generation's scoped-VMEM default when double
    # buffered (8 MiB < 16 MiB on v5e). Small problems use one full-extent
    # block (always layout-legal, no masking needed).
    tile_rows = rows if rows <= max_tile_rows else max_tile_rows
    chunks = -(-rows // tile_rows)

    kernel = _make_ua_sumsq_kernel(rows, tile_rows, chunks)

    # TODO(synk): on dual-TensorCore chips (v7x) shard the chunk axis across
    # cores (pltpu.CORE_PARALLEL / core_map); plain "parallel" does not split.
    partials = pl.pallas_call(
        kernel,
        out_shape=jax.ShapeDtypeStruct((8, lanes), jnp.float32),
        grid=(chunks,),
        in_specs=[pl.BlockSpec((tile_rows, lanes), lambda k: (k, 0))],
        out_specs=pl.BlockSpec((8, lanes), lambda k: (0, 0)),
        compiler_params=pltpu.CompilerParams(
            dimension_semantics=("arbitrary",)),
    )(x2)

    sum_sq = jnp.sum(partials)                    # tiny (8,128) final reduce
    return (1.0 - sum_sq / total) * coef


if __name__ == "__main__":
    key = jax.random.PRNGKey(0)
    k1, k2 = jax.random.split(key)

    N, C, H, W = 2, 4, 16, 16
    seg_logits = jax.random.normal(k1, (N, C, H, W), jnp.float32) * 3.0
    seg_gts = jax.random.uniform(k2, (N, C, H, W), jnp.float32)  # unused, as in reference
    iter_percentage = 0.37

    out = ua_loss(seg_logits, seg_gts, iter_percentage)
    out = jax.block_until_ready(out)

    # Pure-JAX reference of the PyTorch forward.
    sig = jax.nn.sigmoid(seg_logits)
    ref = jnp.mean(1.0 - jnp.abs(2.0 * sig - 1.0) ** 2) * get_coef(iter_percentage)
    np.testing.assert_allclose(np.asarray(out), np.asarray(ref),
                               rtol=1e-5, atol=1e-6)

    print("KERNEL_OK")
</pallas_src>

<mosaic_0001>
module attributes {stable_mosaic.version = 11 : i64} {
  func.func @kernel(%arg0: i32, %arg1: memref<16x128xf32, #tpu.memory_space<vmem>>, %arg2: memref<8x128xf32, #tpu.memory_space<vmem>>) attributes {dimension_semantics = [#tpu.dimension_semantics<arbitrary>], iteration_bounds = array<i64: 1>, scalar_prefetch = 0 : i64, scratch_operands = 0 : i64, tpu.core_type = #tpu.core_type<tc>, window_params = [{transform_indices = @transform_0, window_bounds = array<i64: 16, 128>}, {pipeline_mode = #tpu.pipeline_mode<synchronous>, transform_indices = @transform_1, window_bounds = array<i64: 8, 128>}]} {
    %c0_i32 = arith.constant 0 : i32
    %0 = arith.cmpi eq, %arg0, %c0_i32 : i32
    %1 = arith.extui %0 : i1 to i32
    %c0_i32_0 = arith.constant 0 : i32
    %2 = arith.cmpi ne, %1, %c0_i32_0 : i32
    scf.if %2 {
      %cst_7 = arith.constant 0.000000e+00 : f32
      %13 = vector.broadcast %cst_7 : f32 to vector<8x128xf32>
      %c0_8 = arith.constant 0 : index
      %c0_9 = arith.constant 0 : index
      %14 = vector.load %arg2[%c0_8, %c0_9] : memref<8x128xf32, #tpu.memory_space<vmem>>, vector<8x128xf32>
      tpu.vector_store %arg2[%c0_8, %c0_9], %13 {strides = array<i32>} : memref<8x128xf32, #tpu.memory_space<vmem>>, vector<8x128xf32>,
    } else {
    }
    %c0 = arith.constant 0 : index
    %c0_1 = arith.constant 0 : index
    %3 = vector.load %arg1[%c0, %c0_1] : memref<16x128xf32, #tpu.memory_space<vmem>>, vector<16x128xf32>
    %cst = arith.constant 5.000000e-01 : f32
    %4 = vector.broadcast %cst : f32 to vector<16x128xf32>
    %5 = arith.mulf %4, %3 : vector<16x128xf32>
    %6 = math.tanh %5 : vector<16x128xf32>
    %7 = arith.mulf %6, %6 : vector<16x128xf32>
    %c0_2 = arith.constant 0 : index
    %c0_3 = arith.constant 0 : index
    %8 = vector.load %arg2[%c0_2, %c0_3] : memref<8x128xf32, #tpu.memory_space<vmem>>, vector<8x128xf32>
    %9 = vector.shape_cast %7 : vector<16x128xf32> to vector<2x8x128xf32>
    %cst_4 = arith.constant dense<0.000000e+00> : vector<8x128xf32>
    %10 = vector.multi_reduction <add>, %9, %cst_4 [0] : vector<2x8x128xf32> to vector<8x128xf32>
    %11 = arith.addf %8, %10 : vector<8x128xf32>
    %c0_5 = arith.constant 0 : index
    %c0_6 = arith.constant 0 : index
    %12 = vector.load %arg2[%c0_5, %c0_6] : memref<8x128xf32, #tpu.memory_space<vmem>>, vector<8x128xf32>
    tpu.vector_store %arg2[%c0_5, %c0_6], %11 {strides = array<i32>} : memref<8x128xf32, #tpu.memory_space<vmem>>, vector<8x128xf32>,
    return
  }
  func.func @transform_0(%arg0: i32) -> (i32, i32) {
    %c0_i32 = arith.constant 0 : i32
    %c0_i32_0 = arith.constant 0 : i32
    return %arg0, %c0_i32 : i32, i32
  }
  func.func @transform_1(%arg0: i32) -> (i32, i32) {
    %c0_i32 = arith.constant 0 : i32
    %c0_i32_0 = arith.constant 0 : i32
    %c0_i32_1 = arith.constant 0 : i32
    return %c0_i32, %c0_i32_0 : i32, i32
  }
}

</mosaic_0001>

<llo_original>
// kernel: tpu_custom_call.1
$region0: #{tpu_custom_call.1}
  #allocation0 [shape = 'u32[]', space=smem, size = 0x4, offset = 0x4, fixed_abs, tag = 'smem constant byte address 0x4 - core index']
  #allocation1 [shape = 'u32[144,128]{1,0:T(1,128)}', space=vmem, size = 0x12000, scoped, tag = 'internal scratch']
  %s0 = inlined_call_operand.hbm [shape: f32[16,128], index: 0, kind: input, shape index: {}]
  %s1 = inlined_call_operand.hbm [shape: f32[8,128], index: 1, kind: output, shape index: {}]
  %s2 = sld [smem:[#allocation0]]
  $region22: #{tpu_custom_call.1} parent=0
    _
  %s4 = ssub.s32 1, %s2
  %s5 = scalar_select 0, %s4, %s2
  $region1: #{tpu_custom_call.1} parent=0
    #allocation2 [shape = 'u8[8192]{0}', space=vmem, size = 0x2000, scoped, tag = 'input window, operand 0, single buffered']
    #allocation3 [shape = 's32[1]{0}', space=sflag, size = 0x4, scoped, tag = 'scoped memory for tpu_custom_call.1']
    #allocation4 [shape = 's32[1]{0}', space=sflag, size = 0x4, scoped, tag = 'scoped memory for tpu_custom_call.1']
    #allocation5 [shape = 'u8[4096]{0}', space=vmem, size = 0x1000, scoped, tag = 'output window, operand 0, single buffered']
    %6 = vsyncpa [#allocation3], 0
    %7 = vsyncpa [#allocation4], 0
    // Predicated region
    $region2: #{tpu_custom_call.1} parent=1 // pred_check
      _
    $region3: #{tpu_custom_call.1} parent=1 // pred_check_branch
      %9 = sbr.rel (0) target = $region5
    $region4: #{tpu_custom_call.1} parent=1 // pred_region
      %s11 = ssub.s32 256, 256
      %12 = vsyncadd [#allocation3], %s11
      %s13 = sshll.u32 [#allocation2], 4
      %s14 = int_to_ptr.vmem [resolvable:$true] %s13
      %19 = dma.hbm_to_vmem [thread:$0]  %s0, 256, %s14, [#allocation3], 128, 128, 8
    $region5: #{tpu_custom_call.1} parent=1 // pred_fallthru
      _
    // Predicated region
    $region6: #{tpu_custom_call.1} parent=1 // pred_check
      _
    $region7: #{tpu_custom_call.1} parent=1 // pred_check_branch
      %21 = sbr.rel (0) target = $region9
    $region8: #{tpu_custom_call.1} parent=1 // pred_region
      %22 = dma.done [#allocation3], 256
    $region9: #{tpu_custom_call.1} parent=1 // pred_fallthru
      _
    %p23 = scmp.eq.s32.totalorder 0, 0
    // Predicated region
    $region10: #{tpu_custom_call.1} parent=1 // pred_check
      %p24 = pneg %p23
    $region11: #{tpu_custom_call.1} parent=1 // pred_check_branch
      %26 = sbr.rel (%p24) target = $region13
    $region12: #{tpu_custom_call.1} parent=1 // pred_region
      %27 = vst [vmem:[#allocation5] sm:$0xff] 0.0
    $region13: #{tpu_custom_call.1} parent=1 // pred_fallthru
      _
    %v28 = vld [vmem:[#allocation2] sm:$0xff]
    %v29 = vld [vmem:[#allocation2 + $0x8] sm:$0xff]
    %v30 = vmul.f32 %v28, 0.5
    %v31 = vmul.f32 %v29, 0.5
    %v32 = vtanh.pop %v30
    %v33 = vtanh.pop %v31
    %v34 = vmul.f32 %v32, %v32
    %v35 = vmul.f32 %v33, %v33
    %v36 = vld [vmem:[#allocation5] sm:$0xff]
    %v37 = vadd.f32 %v34, %v35
    %v38 = vadd.f32 %v36, %v37
    %39 = vst [vmem:[#allocation5] sm:$0xff] %v38
    // Predicated region
    $region14: #{tpu_custom_call.1} parent=1 // pred_check
      _
    $region15: #{tpu_custom_call.1} parent=1 // pred_check_branch
      %41 = sbr.rel (0) target = $region17
    $region16: #{tpu_custom_call.1} parent=1 // pred_region
      %s43 = ssub.s32 128, 128
      %44 = vsyncadd [#allocation4], %s43
      %s46 = sshll.u32 [#allocation5], 4
      %s47 = int_to_ptr.vmem [resolvable:$true] %s46
      %49 = dma.vmem_to_hbm [thread:$0]  %s47, 128, %s1, [#allocation4]
    $region17: #{tpu_custom_call.1} parent=1 // pred_fallthru
      _
    // Predicated region
    $region18: #{tpu_custom_call.1} parent=1 // pred_check
      _
    $region19: #{tpu_custom_call.1} parent=1 // pred_check_branch
      %51 = sbr.rel (0) target = $region21
    $region20: #{tpu_custom_call.1} parent=1 // pred_region
      %52 = dma.done [#allocation4], 128
    $region21: #{tpu_custom_call.1} parent=1 // pred_fallthru
      _
    %53 = vsyncpa [#allocation3], 1
    %54 = vsyncpa [#allocation4], 1

</llo_original>
